<compile_context>
chip_gen: v6e
topology: v6e:2x2x1
jax: 0.10.0
libtpu: 0.0.40
codegen_flags: <defaults>
</compile_context>

<pallas_src>
import functools

import numpy as np
import jax
import jax.numpy as jnp
from jax.experimental import pallas as pl
from jax.experimental.pallas import tpu as pltpu


# ------------------------------ helpers -------------------------------------

def hsigmoid(x):
    return jnp.clip(x + 3.0, 0.0, 6.0) * (1.0 / 6.0)


def fold_bn(gamma, beta, mean, var, eps=1e-5):
    scale = gamma / jnp.sqrt(var + eps)
    return scale.astype(jnp.float32), (beta - mean * scale).astype(jnp.float32)


# --------------------------- Pallas kernel -----------------------------------

def _se_fused_kernel(x_ref, w1_ref, s1_ref, b1_ref, w2_ref, s2_ref, b2_ref,
                     o_ref, *, inv_hw):
    """Fused per-sample SE: global-avg-pool -> 1x1conv+BN+ReLU ->
    1x1conv+BN+hsigmoid -> x * gate.  x_ref / o_ref: (1, C, S) in the model's
    native dtype; all gate math in f32."""
    x = x_ref[...]                                                    # (1, C, S)
    pooled = jnp.sum(x.astype(jnp.float32), axis=-1) * inv_hw         # (1, C)
    z = jnp.dot(pooled, w1_ref[...], preferred_element_type=jnp.float32)
    z = jnp.maximum(z * s1_ref[...] + b1_ref[...], 0.0)               # (1, Cr)
    g = jnp.dot(z, w2_ref[...], preferred_element_type=jnp.float32)
    g = hsigmoid(g * s2_ref[...] + b2_ref[...])                       # (1, C)
    o_ref[...] = x * g[:, :, None].astype(x.dtype)                    # (1, C, S)


# ------------------------------ wrapper --------------------------------------

def se_module(x_nchw, w1, s1, b1, w2, s2, b2):
    """SeModule.forward in eval mode.  x_nchw: (N, C, H, W), any float dtype;
    output has the same dtype as x."""
    N, C, H, W = x_nchw.shape
    S = H * W
    Cr = w1.shape[1]
    x2 = x_nchw.reshape(N, C, S)        # free reshape: no transpose, native dtype

    # VMEM: in + out per-sample slabs, double-buffered, plus tiny weights.
    elt = jnp.dtype(x_nchw.dtype).itemsize
    block_bytes = C * S * elt
    vmem_need = 4 * block_bytes + 4 * (2 * C * Cr + 2 * (C + Cr)) + (2 << 20)
    vmem_limit = int(min(max(vmem_need, 16 << 20), 128 << 20))

    out = pl.pallas_call(
        functools.partial(_se_fused_kernel, inv_hw=1.0 / float(S)),
        out_shape=jax.ShapeDtypeStruct((N, C, S), x_nchw.dtype),
        grid_spec=pltpu.PrefetchScalarGridSpec(
            num_scalar_prefetch=0,
            grid=(N,),
            in_specs=[
                pl.BlockSpec((1, C, S), lambda n: (n, 0, 0)),
                pl.BlockSpec((C, Cr), lambda n: (0, 0)),
                pl.BlockSpec((1, Cr), lambda n: (0, 0)),
                pl.BlockSpec((1, Cr), lambda n: (0, 0)),
                pl.BlockSpec((Cr, C), lambda n: (0, 0)),
                pl.BlockSpec((1, C), lambda n: (0, 0)),
                pl.BlockSpec((1, C), lambda n: (0, 0)),
            ],
            out_specs=pl.BlockSpec((1, C, S), lambda n: (n, 0, 0)),
        ),
        compiler_params=pltpu.CompilerParams(
            dimension_semantics=("parallel",),     # shards N across TCs (v7x)
            vmem_limit_bytes=vmem_limit),
    )(x2, w1, s1.reshape(1, Cr), b1.reshape(1, Cr),
      w2, s2.reshape(1, C), b2.reshape(1, C))

    return out.reshape(N, C, H, W)


# ------------------------- params & reference --------------------------------

def make_params(key, C, reduction=4):
    Cr = C // reduction
    ks = jax.random.split(key, 4)

    def w(k, shape, scale=0.1):
        return (scale * jax.random.normal(k, shape)).astype(jnp.float32)

    def bn(k, n):
        k1, k2, k3, k4 = jax.random.split(k, 4)
        gamma = 1.0 + 0.1 * jax.random.normal(k1, (n,))
        beta = 0.1 * jax.random.normal(k2, (n,))
        mean = 0.1 * jax.random.normal(k3, (n,))
        var = 1.0 + 0.1 * jax.random.uniform(k4, (n,))
        return fold_bn(gamma, beta, mean, var)

    w1 = w(ks[0], (C, Cr))          # conv1.weight[cr, c, 0, 0] transposed
    s1, b1 = bn(ks[1], Cr)
    w2 = w(ks[2], (Cr, C))
    s2, b2 = bn(ks[3], C)
    return w1, s1, b1, w2, s2, b2


def reference(x_nchw, w1, s1, b1, w2, s2, b2):
    """Pure-JAX SeModule.forward (eval-mode BN), computed in f32."""
    xf = x_nchw.astype(jnp.float32)
    pooled = jnp.mean(xf, axis=(2, 3))                               # (N, C)
    z = jnp.maximum((pooled @ w1) * s1 + b1, 0.0)
    g = hsigmoid((z @ w2) * s2 + b2)
    return xf * g[:, :, None, None]


# --------------------------------- main ---------------------------------------

if __name__ == "__main__":
    key = jax.random.PRNGKey(0)
    kx, kp = jax.random.split(key)

    # SeModule(in_size=16, reduction=4) on a (2, 16, 16, 16) NCHW input.
    N, C, H, W = 2, 16, 16, 16
    x = jax.random.normal(kx, (N, C, H, W), dtype=jnp.float32)
    params = make_params(kp, C, reduction=4)

    # ---- float32 path: tight check against the f32 reference ----
    out = jax.block_until_ready(se_module(x, *params))
    ref = reference(x, *params)
    assert out.shape == (N, C, H, W) and out.dtype == jnp.float32
    np.testing.assert_allclose(np.asarray(out), np.asarray(ref),
                               rtol=1e-4, atol=1e-4)

    # ---- bf16 path: native-dtype I/O (no f32 up-cast of x), loose check ----
    x_bf = x.astype(jnp.bfloat16)
    out_bf = jax.block_until_ready(se_module(x_bf, *params))
    assert out_bf.shape == (N, C, H, W) and out_bf.dtype == jnp.bfloat16
    ref_bf = reference(x_bf, *params)
    np.testing.assert_allclose(np.asarray(out_bf, dtype=np.float32),
                               np.asarray(ref_bf), rtol=3e-2, atol=3e-2)

    print("KERNEL_OK")
</pallas_src>

<mosaic_0001>
module attributes {stable_mosaic.version = 11 : i64} {
  func.func @_se_fused_kernel(%arg0: i32, %arg1: memref<1x16x256xf32, #tpu.memory_space<vmem>>, %arg2: memref<16x4xf32, #tpu.memory_space<vmem>>, %arg3: memref<1x4xf32, #tpu.memory_space<vmem>>, %arg4: memref<1x4xf32, #tpu.memory_space<vmem>>, %arg5: memref<4x16xf32, #tpu.memory_space<vmem>>, %arg6: memref<1x16xf32, #tpu.memory_space<vmem>>, %arg7: memref<1x16xf32, #tpu.memory_space<vmem>>, %arg8: memref<1x16x256xf32, #tpu.memory_space<vmem>>) attributes {dimension_semantics = [#tpu.dimension_semantics<parallel>], iteration_bounds = array<i64: 2>, scalar_prefetch = 0 : i64, scratch_operands = 0 : i64, tpu.core_type = #tpu.core_type<tc>, window_params = [{transform_indices = @transform_0, window_bounds = array<i64: 1, 16, 256>}, {pipeline_mode = #tpu.pipeline_mode<synchronous>, transform_indices = @transform_1, window_bounds = array<i64: 16, 4>}, {pipeline_mode = #tpu.pipeline_mode<synchronous>, transform_indices = @transform_2, window_bounds = array<i64: 1, 4>}, {pipeline_mode = #tpu.pipeline_mode<synchronous>, transform_indices = @transform_3, window_bounds = array<i64: 1, 4>}, {pipeline_mode = #tpu.pipeline_mode<synchronous>, transform_indices = @transform_4, window_bounds = array<i64: 4, 16>}, {pipeline_mode = #tpu.pipeline_mode<synchronous>, transform_indices = @transform_5, window_bounds = array<i64: 1, 16>}, {pipeline_mode = #tpu.pipeline_mode<synchronous>, transform_indices = @transform_6, window_bounds = array<i64: 1, 16>}, {transform_indices = @transform_7, window_bounds = array<i64: 1, 16, 256>}]} {
    %c0 = arith.constant 0 : index
    %c0_0 = arith.constant 0 : index
    %c0_1 = arith.constant 0 : index
    %0 = vector.load %arg1[%c0, %c0_0, %c0_1] : memref<1x16x256xf32, #tpu.memory_space<vmem>>, vector<1x16x256xf32>
    %cst = arith.constant dense<0.000000e+00> : vector<1x16xf32>
    %1 = vector.multi_reduction <add>, %0, %cst [2] : vector<1x16x256xf32> to vector<1x16xf32>
    %cst_2 = arith.constant 3.906250e-03 : f32
    %2 = vector.broadcast %cst_2 : f32 to vector<1x16xf32>
    %3 = arith.mulf %1, %2 : vector<1x16xf32>
    %c0_3 = arith.constant 0 : index
    %c0_4 = arith.constant 0 : index
    %4 = vector.load %arg2[%c0_3, %c0_4] : memref<16x4xf32, #tpu.memory_space<vmem>>, vector<16x4xf32>
    %cst_5 = arith.constant dense<0.000000e+00> : vector<1x4xf32>
    %5 = tpu.matmul %3, %4, %cst_5 {dimension_numbers = #tpu.dot_dimension_numbers<[1], [0], [0], [1], [0, 0, 1, 1], [], []>} : vector<1x16xf32>, vector<16x4xf32>, vector<1x4xf32> -> vector<1x4xf32>
    %c0_6 = arith.constant 0 : index
    %c0_7 = arith.constant 0 : index
    %6 = vector.load %arg3[%c0_6, %c0_7] : memref<1x4xf32, #tpu.memory_space<vmem>>, vector<1x4xf32>
    %7 = arith.mulf %5, %6 : vector<1x4xf32>
    %c0_8 = arith.constant 0 : index
    %c0_9 = arith.constant 0 : index
    %8 = vector.load %arg4[%c0_8, %c0_9] : memref<1x4xf32, #tpu.memory_space<vmem>>, vector<1x4xf32>
    %9 = arith.addf %7, %8 : vector<1x4xf32>
    %cst_10 = arith.constant 0.000000e+00 : f32
    %10 = vector.broadcast %cst_10 : f32 to vector<1x4xf32>
    %11 = arith.maximumf %9, %10 : vector<1x4xf32>
    %c0_11 = arith.constant 0 : index
    %c0_12 = arith.constant 0 : index
    %12 = vector.load %arg5[%c0_11, %c0_12] : memref<4x16xf32, #tpu.memory_space<vmem>>, vector<4x16xf32>
    %cst_13 = arith.constant dense<0.000000e+00> : vector<1x16xf32>
    %13 = tpu.matmul %11, %12, %cst_13 {dimension_numbers = #tpu.dot_dimension_numbers<[1], [0], [0], [1], [0, 0, 1, 1], [], []>} : vector<1x4xf32>, vector<4x16xf32>, vector<1x16xf32> -> vector<1x16xf32>
    %c0_14 = arith.constant 0 : index
    %c0_15 = arith.constant 0 : index
    %14 = vector.load %arg6[%c0_14, %c0_15] : memref<1x16xf32, #tpu.memory_space<vmem>>, vector<1x16xf32>
    %15 = arith.mulf %13, %14 : vector<1x16xf32>
    %c0_16 = arith.constant 0 : index
    %c0_17 = arith.constant 0 : index
    %16 = vector.load %arg7[%c0_16, %c0_17] : memref<1x16xf32, #tpu.memory_space<vmem>>, vector<1x16xf32>
    %17 = arith.addf %15, %16 : vector<1x16xf32>
    %cst_18 = arith.constant 3.000000e+00 : f32
    %18 = vector.broadcast %cst_18 : f32 to vector<1x16xf32>
    %19 = arith.addf %17, %18 : vector<1x16xf32>
    %cst_19 = arith.constant 0.000000e+00 : f32
    %cst_20 = arith.constant 6.000000e+00 : f32
    %20 = vector.broadcast %cst_19 : f32 to vector<1x16xf32>
    %21 = arith.maximumf %20, %19 : vector<1x16xf32>
    %22 = vector.broadcast %cst_20 : f32 to vector<1x16xf32>
    %23 = arith.minimumf %22, %21 : vector<1x16xf32>
    %cst_21 = arith.constant 0.166666672 : f32
    %24 = vector.broadcast %cst_21 : f32 to vector<1x16xf32>
    %25 = arith.mulf %23, %24 : vector<1x16xf32>
    %26 = vector.shape_cast %25 : vector<1x16xf32> to vector<1x16x1xf32>
    %27 = vector.broadcast %26 : vector<1x16x1xf32> to vector<1x16x256xf32>
    %28 = arith.mulf %0, %27 : vector<1x16x256xf32>
    %c0_22 = arith.constant 0 : index
    %c0_23 = arith.constant 0 : index
    %c0_24 = arith.constant 0 : index
    %29 = vector.load %arg8[%c0_22, %c0_23, %c0_24] : memref<1x16x256xf32, #tpu.memory_space<vmem>>, vector<1x16x256xf32>
    tpu.vector_store %arg8[%c0_22, %c0_23, %c0_24], %28 {strides = array<i32>} : memref<1x16x256xf32, #tpu.memory_space<vmem>>, vector<1x16x256xf32>,
    return
  }
  func.func @transform_0(%arg0: i32) -> (i32, i32, i32) {
    %c0_i32 = arith.constant 0 : i32
    %c0_i32_0 = arith.constant 0 : i32
    %c0_i32_1 = arith.constant 0 : i32
    return %arg0, %c0_i32, %c0_i32_0 : i32, i32, i32
  }
  func.func @transform_1(%arg0: i32) -> (i32, i32) {
    %c0_i32 = arith.constant 0 : i32
    %c0_i32_0 = arith.constant 0 : i32
    %c0_i32_1 = arith.constant 0 : i32
    return %c0_i32, %c0_i32_0 : i32, i32
  }
  func.func @transform_2(%arg0: i32) -> (i32, i32) {
    %c0_i32 = arith.constant 0 : i32
    %c0_i32_0 = arith.constant 0 : i32
    %c0_i32_1 = arith.constant 0 : i32
    return %c0_i32, %c0_i32_0 : i32, i32
  }
  func.func @transform_3(%arg0: i32) -> (i32, i32) {
    %c0_i32 = arith.constant 0 : i32
    %c0_i32_0 = arith.constant 0 : i32
    %c0_i32_1 = arith.constant 0 : i32
    return %c0_i32, %c0_i32_0 : i32, i32
  }
  func.func @transform_4(%arg0: i32) -> (i32, i32) {
    %c0_i32 = arith.constant 0 : i32
    %c0_i32_0 = arith.constant 0 : i32
    %c0_i32_1 = arith.constant 0 : i32
    return %c0_i32, %c0_i32_0 : i32, i32
  }
  func.func @transform_5(%arg0: i32) -> (i32, i32) {
    %c0_i32 = arith.constant 0 : i32
    %c0_i32_0 = arith.constant 0 : i32
    %c0_i32_1 = arith.constant 0 : i32
    return %c0_i32, %c0_i32_0 : i32, i32
  }
  func.func @transform_6(%arg0: i32) -> (i32, i32) {
    %c0_i32 = arith.constant 0 : i32
    %c0_i32_0 = arith.constant 0 : i32
    %c0_i32_1 = arith.constant 0 : i32
    return %c0_i32, %c0_i32_0 : i32, i32
  }
  func.func @transform_7(%arg0: i32) -> (i32, i32, i32) {
    %c0_i32 = arith.constant 0 : i32
    %c0_i32_0 = arith.constant 0 : i32
    %c0_i32_1 = arith.constant 0 : i32
    return %arg0, %c0_i32, %c0_i32_0 : i32, i32, i32
  }
}

</mosaic_0001>

<llo_original>
// kernel: tpu_custom_call.1
$region0: #{tpu_custom_call.1}
  #allocation0 [shape = 'u32[]', space=smem, size = 0x4, offset = 0x4, fixed_abs, tag = 'smem constant byte address 0x4 - core index']
  #allocation1 [shape = 'u32[144,128]{1,0:T(1,128)}', space=vmem, size = 0x12000, scoped, tag = 'internal scratch']
  %s0 = inlined_call_operand.hbm [shape: f32[2,16,256], index: 0, kind: input, shape index: {}]
  %s1 = inlined_call_operand.vmem [shape: f32[16,4], index: 1, kind: input, shape index: {}]
  %s2 = inlined_call_operand.vmem [shape: f32[1,4], index: 2, kind: input, shape index: {}]
  %s3 = inlined_call_operand.vmem [shape: f32[1,4], index: 3, kind: input, shape index: {}]
  %s4 = inlined_call_operand.vmem [shape: f32[4,16], index: 4, kind: input, shape index: {}]
  %s5 = inlined_call_operand.vmem [shape: f32[1,16], index: 5, kind: input, shape index: {}]
  %s6 = inlined_call_operand.vmem [shape: f32[1,16], index: 6, kind: input, shape index: {}]
  %s7 = inlined_call_operand.hbm [shape: f32[2,16,256], index: 7, kind: output, shape index: {}]
  %s8 = sld [smem:[#allocation0]]
  $region65: #{tpu_custom_call.1} parent=0
    _
  %s10 = ssub.s32 1, %s8
  %s11 = scalar_select 0, %s10, %s8
  $region1: #{tpu_custom_call.1} parent=0
    #allocation2 [shape = 'u8[32768]{0}', space=vmem, size = 0x8000, scoped, tag = 'input window, operand 0']
    #allocation3 [shape = 's32[2]{0}', space=sflag, size = 0x8, scoped, tag = 'scoped memory for tpu_custom_call.1']
    #allocation4 [shape = 's32[2]{0}', space=sflag, size = 0x8, scoped, tag = 'scoped memory for tpu_custom_call.1']
    #allocation5 [shape = 'u8[32768]{0}', space=vmem, size = 0x8000, scoped, tag = 'output window, operand 0']
    %12 = vsyncpa [#allocation3], 0
    %s13 = scalar_lea.sflag [#allocation3], 1
    %14 = vsyncpa %s13, 0
    %15 = vsyncpa [#allocation4], 0
    %s16 = scalar_lea.sflag [#allocation4], 1
    %17 = vsyncpa %s16, 0
    loop: start=0, step=1, limit=4
    $region2: #{tpu_custom_call.1} parent=1 // loop_pre_header
      _
    $region3: #{tpu_custom_call.1} parent=1 // loop_header
      %s19 = sphi 0, %s23
      %p20 = scmp.ge.s32.totalorder %s19, 4
      %s29 = sphi 0, %s31
      %s32 = sphi 0, %s29
      %s33 = sphi 0, %s32
      %s49 = sphi 0, %s33
      %s53 = sphi 0, %s53
      %s55 = sphi 0, %s53
      %s56 = sphi 0, %s55
      %s70 = sphi 0, %s56
      %s74 = sphi 0, %s74
      %s76 = sphi 0, %s74
      %s77 = sphi 0, %s76
      %s91 = sphi 0, %s77
      %s95 = sphi 0, %s95
      %s97 = sphi 0, %s95
      %s98 = sphi 0, %s97
      %s112 = sphi 0, %s98
      %s116 = sphi 0, %s116
      %s118 = sphi 0, %s116
      %s119 = sphi 0, %s118
      %s133 = sphi 0, %s119
      %s137 = sphi 0, %s137
      %s139 = sphi 0, %s137
      %s140 = sphi 0, %s139
      %s154 = sphi 0, %s140
      %s158 = sphi 0, %s158
      %s160 = sphi 0, %s158
      %s161 = sphi 0, %s160
      %s175 = sphi 0, %s161
      %s181 = sphi 0, %s183
      %s184 = sphi 0, %s181
      %s185 = sphi 0, %s184
      %s201 = sphi 0, %s185
    $region4: #{tpu_custom_call.1} parent=1 // loop_header_branch
      %22 = sbr.rel (%p20) target = $region8
    $region5: #{tpu_custom_call.1} parent=1 // loop_body
      %s24 = ssub.s32 %s19, 1
      %s25 = ssub.s32 %s19, 2
      %s26 = sadd.s32 %s19, 1
      %s27 = ssub.s32 %s19, %s26
      %p28 = scmp.eq.s32.totalorder %s27, 0
      %s30 = sadd.s32 %s29, 1
      %s31 = scalar_select %p28, %s29, %s30
      %p34 = pneg %p28
      %p35 = scmp.eq.s32.totalorder %s19, 1
      %p36 = por %p34, %p35
      %p37 = scmp.ne.s32.totalorder %s29, %s32
      %p38 = scmp.eq.s32.totalorder %s19, 0
      %p39 = por %p37, %p38
      %p40 = scmp.ne.s32.totalorder %s29, %s32
      %p41 = scmp.eq.s32.totalorder %s24, 1
      %p42 = por %p40, %p41
      %p43 = scmp.ne.s32.totalorder %s32, %s33
      %p44 = scmp.eq.s32.totalorder %s24, 0
      %p45 = por %p43, %p44
      %p46 = scmp.ne.s32.totalorder %s32, %s33
      %p47 = scmp.eq.s32.totalorder %s25, 1
      %p48 = por %p46, %p47
      %p50 = scmp.ne.s32.totalorder %s33, %s49
      %p51 = scmp.eq.s32.totalorder %s25, 0
      %p52 = por %p50, %p51
      %s54 = sadd.s32 %s53, 1
      %p57 = scmp.eq.s32.totalorder %s19, 1
      %p58 = scmp.ne.s32.totalorder %s53, %s55
      %p59 = scmp.eq.s32.totalorder %s19, 0
      %p60 = por %p58, %p59
      %p61 = scmp.ne.s32.totalorder %s53, %s55
      %p62 = scmp.eq.s32.totalorder %s24, 1
      %p63 = por %p61, %p62
      %p64 = scmp.ne.s32.totalorder %s55, %s56
      %p65 = scmp.eq.s32.totalorder %s24, 0
      %p66 = por %p64, %p65
      %p67 = scmp.ne.s32.totalorder %s55, %s56
      %p68 = scmp.eq.s32.totalorder %s25, 1
      %p69 = por %p67, %p68
      %p71 = scmp.ne.s32.totalorder %s56, %s70
      %p72 = scmp.eq.s32.totalorder %s25, 0
      %p73 = por %p71, %p72
      %s75 = sadd.s32 %s74, 1
      %p78 = scmp.eq.s32.totalorder %s19, 1
      %p79 = scmp.ne.s32.totalorder %s74, %s76
      %p80 = scmp.eq.s32.totalorder %s19, 0
      %p81 = por %p79, %p80
      %p82 = scmp.ne.s32.totalorder %s74, %s76
      %p83 = scmp.eq.s32.totalorder %s24, 1
      %p84 = por %p82, %p83
      %p85 = scmp.ne.s32.totalorder %s76, %s77
      %p86 = scmp.eq.s32.totalorder %s24, 0
      %p87 = por %p85, %p86
      %p88 = scmp.ne.s32.totalorder %s76, %s77
      %p89 = scmp.eq.s32.totalorder %s25, 1
      %p90 = por %p88, %p89
      %p92 = scmp.ne.s32.totalorder %s77, %s91
      %p93 = scmp.eq.s32.totalorder %s25, 0
      %p94 = por %p92, %p93
      %s96 = sadd.s32 %s95, 1
      %p99 = scmp.eq.s32.totalorder %s19, 1
      %p100 = scmp.ne.s32.totalorder %s95, %s97
      %p101 = scmp.eq.s32.totalorder %s19, 0
      %p102 = por %p100, %p101
      %p103 = scmp.ne.s32.totalorder %s95, %s97
      %p104 = scmp.eq.s32.totalorder %s24, 1
      %p105 = por %p103, %p104
      %p106 = scmp.ne.s32.totalorder %s97, %s98
      %p107 = scmp.eq.s32.totalorder %s24, 0
      %p108 = por %p106, %p107
      %p109 = scmp.ne.s32.totalorder %s97, %s98
      %p110 = scmp.eq.s32.totalorder %s25, 1
      %p111 = por %p109, %p110
      %p113 = scmp.ne.s32.totalorder %s98, %s112
      %p114 = scmp.eq.s32.totalorder %s25, 0
      %p115 = por %p113, %p114
      %s117 = sadd.s32 %s116, 1
      %p120 = scmp.eq.s32.totalorder %s19, 1
      %p121 = scmp.ne.s32.totalorder %s116, %s118
      %p122 = scmp.eq.s32.totalorder %s19, 0
      %p123 = por %p121, %p122
      %p124 = scmp.ne.s32.totalorder %s116, %s118
      %p125 = scmp.eq.s32.totalorder %s24, 1
      %p126 = por %p124, %p125
      %p127 = scmp.ne.s32.totalorder %s118, %s119
      %p128 = scmp.eq.s32.totalorder %s24, 0
      %p129 = por %p127, %p128
      %p130 = scmp.ne.s32.totalorder %s118, %s119
      %p131 = scmp.eq.s32.totalorder %s25, 1
      %p132 = por %p130, %p131
      %p134 = scmp.ne.s32.totalorder %s119, %s133
      %p135 = scmp.eq.s32.totalorder %s25, 0
      %p136 = por %p134, %p135
      %s138 = sadd.s32 %s137, 1
      %p141 = scmp.eq.s32.totalorder %s19, 1
      %p142 = scmp.ne.s32.totalorder %s137, %s139
      %p143 = scmp.eq.s32.totalorder %s19, 0
      %p144 = por %p142, %p143
      %p145 = scmp.ne.s32.totalorder %s137, %s139
      %p146 = scmp.eq.s32.totalorder %s24, 1
      %p147 = por %p145, %p146
      %p148 = scmp.ne.s32.totalorder %s139, %s140
      %p149 = scmp.eq.s32.totalorder %s24, 0
      %p150 = por %p148, %p149
      %p151 = scmp.ne.s32.totalorder %s139, %s140
      %p152 = scmp.eq.s32.totalorder %s25, 1
      %p153 = por %p151, %p152
      %p155 = scmp.ne.s32.totalorder %s140, %s154
      %p156 = scmp.eq.s32.totalorder %s25, 0
      %p157 = por %p155, %p156
      %s159 = sadd.s32 %s158, 1
      %p162 = scmp.eq.s32.totalorder %s19, 1
      %p163 = scmp.ne.s32.totalorder %s158, %s160
      %p164 = scmp.eq.s32.totalorder %s19, 0
      %p165 = por %p163, %p164
      %p166 = scmp.ne.s32.totalorder %s158, %s160
      %p167 = scmp.eq.s32.totalorder %s24, 1
      %p168 = por %p166, %p167
      %p169 = scmp.ne.s32.totalorder %s160, %s161
      %p170 = scmp.eq.s32.totalorder %s24, 0
      %p171 = por %p169, %p170
      %p172 = scmp.ne.s32.totalorder %s160, %s161
      %p173 = scmp.eq.s32.totalorder %s25, 1
      %p174 = por %p172, %p173
      %p176 = scmp.ne.s32.totalorder %s161, %s175
      %p177 = scmp.eq.s32.totalorder %s25, 0
      %p178 = por %p176, %p177
      %s179 = ssub.s32 %s19, %s26
      %p180 = scmp.eq.s32.totalorder %s179, 0
      %s182 = sadd.s32 %s181, 1
      %s183 = scalar_select %p180, %s181, %s182
      %p186 = pneg %p180
      %p187 = scmp.eq.s32.totalorder %s19, 1
      %p188 = por %p186, %p187
      %p189 = scmp.ne.s32.totalorder %s181, %s184
      %p190 = scmp.eq.s32.totalorder %s19, 0
      %p191 = por %p189, %p190
      %p192 = scmp.ne.s32.totalorder %s181, %s184
      %p193 = scmp.eq.s32.totalorder %s24, 1
      %p194 = por %p192, %p193
      %p195 = scmp.ne.s32.totalorder %s184, %s185
      %p196 = scmp.eq.s32.totalorder %s24, 0
      %p197 = por %p195, %p196
      %p198 = scmp.ne.s32.totalorder %s184, %s185
      %p199 = scmp.eq.s32.totalorder %s25, 1
      %p200 = por %p198, %p199
      %p202 = scmp.ne.s32.totalorder %s185, %s201
      %p203 = scmp.eq.s32.totalorder %s25, 0
      %p204 = por %p202, %p203
      %p205 = scmp.le.s32.totalorder 1, %s19
      %p206 = scmp.lt.s32.totalorder %s19, 3
      %p207 = pnand %p205, %p206
      %p208 = pneg %p207
      // Predicated region
      $region9: #{tpu_custom_call.1} parent=5 // pred_check
        _
      $region10: #{tpu_custom_call.1} parent=5 // pred_check_branch
        %210 = sbr.rel (%p207) target = $region12
      $region11: #{tpu_custom_call.1} parent=5 // pred_region
        %s211 = ssub.s32 %s19, 1
        // Predicated region
        $region13: #{tpu_custom_call.1} parent=11 // pred_check
          %p212 = pneg %p66
        $region14: #{tpu_custom_call.1} parent=11 // pred_check_branch
          %214 = sbr.rel (%p212) target = $region16
        $region15: #{tpu_custom_call.1} parent=11 // pred_region
          _
        $region16: #{tpu_custom_call.1} parent=11 // pred_fallthru
          _
        // Predicated region
        $region17: #{tpu_custom_call.1} parent=11 // pred_check
          %p215 = pneg %p87
        $region18: #{tpu_custom_call.1} parent=11 // pred_check_branch
          %217 = sbr.rel (%p215) target = $region20
        $region19: #{tpu_custom_call.1} parent=11 // pred_region
          _
        $region20: #{tpu_custom_call.1} parent=11 // pred_fallthru
          _
        // Predicated region
        $region21: #{tpu_custom_call.1} parent=11 // pred_check
          %p218 = pneg %p108
        $region22: #{tpu_custom_call.1} parent=11 // pred_check_branch
          %220 = sbr.rel (%p218) target = $region24
        $region23: #{tpu_custom_call.1} parent=11 // pred_region
          _
        $region24: #{tpu_custom_call.1} parent=11 // pred_fallthru
          _
        // Predicated region
        $region25: #{tpu_custom_call.1} parent=11 // pred_check
          %p221 = pneg %p129
        $region26: #{tpu_custom_call.1} parent=11 // pred_check_branch
          %223 = sbr.rel (%p221) target = $region28
        $region27: #{tpu_custom_call.1} parent=11 // pred_region
          _
        $region28: #{tpu_custom_call.1} parent=11 // pred_fallthru
          _
        // Predicated region
        $region29: #{tpu_custom_call.1} parent=11 // pred_check
          %p224 = pneg %p150
        $region30: #{tpu_custom_call.1} parent=11 // pred_check_branch
          %226 = sbr.rel (%p224) target = $region32
        $region31: #{tpu_custom_call.1} parent=11 // pred_region
          _
        $region32: #{tpu_custom_call.1} parent=11 // pred_fallthru
          _
        // Predicated region
        $region33: #{tpu_custom_call.1} parent=11 // pred_check
          %p227 = pneg %p171
        $region34: #{tpu_custom_call.1} parent=11 // pred_check_branch
          %229 = sbr.rel (%p227) target = $region36
        $region35: #{tpu_custom_call.1} parent=11 // pred_region
          _
        $region36: #{tpu_custom_call.1} parent=11 // pred_fallthru
          _
      $region12: #{tpu_custom_call.1} parent=5 // pred_fallthru
        _
      %p230 = scmp.lt.s32.totalorder %s19, 2
      // Predicated region
      $region37: #{tpu_custom_call.1} parent=5 // pred_check
        %p231 = pneg %p230
      $region38: #{tpu_custom_call.1} parent=5 // pred_check_branch
        %233 = sbr.rel (%p231) target = $region40
      $region39: #{tpu_custom_call.1} parent=5 // pred_region
        // Predicated region
        $region41: #{tpu_custom_call.1} parent=39 // pred_check
          %p234 = pneg %p39
        $region42: #{tpu_custom_call.1} parent=39 // pred_check_branch
          %236 = sbr.rel (%p234) target = $region44
        $region43: #{tpu_custom_call.1} parent=39 // pred_region
          %s237 = sand.u32 %s29, 1
          %s238 = scalar_lea.sflag [#allocation3], %s237
          %s239 = sand.u32 %s29, 1
          %s240 = smul.addr %s239, 32
          %s241 = scalar_lea.vmem [#allocation2], %s240
          %s243 = ssub.s32 512, 512
          %244 = vsyncadd %s238, %s243
          %s245 = smul.addr %s19, 4
          %s246 = smul.addr %s245, 128
          %s247 = scalar_lea.hbm %s0, %s246
          %s248 = sshll.u32 %s241, 4
          %s249 = int_to_ptr.vmem [resolvable:$true] %s248
          %254 = dma.hbm_to_vmem [thread:$0]  %s247, 512, %s249, %s238, 256, 256, 16
        $region44: #{tpu_custom_call.1} parent=39 // pred_fallthru
          _
      $region40: #{tpu_custom_call.1} parent=5 // pred_fallthru
        _
      %p255 = scmp.le.s32.totalorder 1, %s19
      %p256 = scmp.lt.s32.totalorder %s19, 3
      %p257 = pnand %p255, %p256
      %p258 = pneg %p257
      // Predicated region
      $region45: #{tpu_custom_call.1} parent=5 // pred_check
        _
      $region46: #{tpu_custom_call.1} parent=5 // pred_check_branch
        %260 = sbr.rel (%p257) target = $region48
      $region47: #{tpu_custom_call.1} parent=5 // pred_region
        %s261 = ssub.s32 %s19, 1
        %s262 = sand.u32 %s32, 1
        %s263 = scalar_lea.sflag [#allocation3], %s262
        %s264 = sand.u32 %s32, 1
        %s265 = smul.addr %s264, 32
        %s266 = scalar_lea.vmem [#allocation2], %s265
        // Predicated region
        $region49: #{tpu_custom_call.1} parent=47 // pred_check
          %p267 = pneg %p45
        $region50: #{tpu_custom_call.1} parent=47 // pred_check_branch
          %269 = sbr.rel (%p267) target = $region52
        $region51: #{tpu_custom_call.1} parent=47 // pred_region
          %270 = dma.done %s263, 512
        $region52: #{tpu_custom_call.1} parent=47 // pred_fallthru
          _
        %s271 = sand.u32 %s32, 1
        %s272 = scalar_lea.sflag [#allocation3], %s271
        %s273 = sand.u32 %s32, 1
        %s274 = smul.addr %s273, 32
        %s275 = scalar_lea.vmem [#allocation2], %s274
        %p276 = pneg %p45
        %p277 = pneg %p42
        %p278 = pneg %p66
        %p279 = pneg %p63
        %p280 = pneg %p87
        %p281 = pneg %p84
        %p282 = pneg %p108
        %p283 = pneg %p105
        %p284 = pneg %p129
        %p285 = pneg %p126
        %p286 = pneg %p150
        %p287 = pneg %p147
        %p288 = pneg %p171
        %p289 = pneg %p168
        %p290 = pneg %p197
        %p291 = pneg %p194
        %s292 = sand.u32 %s184, 1
        %s293 = scalar_lea.sflag [#allocation4], %s292
        %s294 = sand.u32 %s184, 1
        %s295 = smul.addr %s294, 32
        %s296 = scalar_lea.vmem [#allocation5], %s295
        %v297 = vld [vmem:[%s266] sm:$0xff]
        %v298 = vld [vmem:[%s266 + $0x8] sm:$0xff]
        %v299 = vld [vmem:[%s266 + $0x10] sm:$0xff]
        %v300 = vld [vmem:[%s266 + $0x18] sm:$0xff]
        %v301 = vadd.f32 %v297, %v298
        %302 = vadd.xlane.f32.xlu0 %v301
        %v303 = vpop.xlane.xlu0 %302
        %v304 = vadd.f32 %v299, %v300
        %305 = vadd.xlane.f32.xlu0 %v304
        %v306 = vpop.xlane.xlu0 %305
        %v307 = vmul.f32 %v303, 0.00390625
        %v308 = vmul.f32 %v306, 0.00390625
        %v309 = vld [vmem:[%s1] sm:$0xff]
        %v310 = vld [vmem:[%s1 + $0x8] sm:$0xff]
        %v313 = vlaneseq
        %v314 = vand.u32 %v313, 127
        %v315 = vlaneseq
        %v316 = vshrl.u32 %v315, 7
        %v317 = vsub.s32 %v314, %v316
        %v318 = vrot.slane %v307, %v317
        %v319 = vadd.s32 %v314, 4294967288
        %v320 = vlaneseq
        %v321 = vshrl.u32 %v320, 7
        %v322 = vsub.s32 %v319, %v321
        %v323 = vrot.slane %v308, %v322
        %vm324 = vcmask 130112
        %v325 = vsel %vm324, %v323, %v318
        %vm326 = vcmask 130048
        %v327 = vsel %vm326, %v325, 0
        %329 = vmatprep.subr.mxu0 0.0
        %330 = vmatpush1.msra.mxu0 0.0
        %331 = vmatprep.subr.mxu0 0.0
        %332 = vmatpush1.msra.mxu0 0.0
        %333 = vmatprep.subr.mxu0 0.0
        %334 = vmatpush1.msra.mxu0 0.0
        %335 = vmatprep.subr.mxu0 0.0
        %336 = vmatpush1.msra.mxu0 0.0
        %337 = vmatprep.subr.mxu0 0.0
        %338 = vmatpush1.msra.mxu0 0.0
        %339 = vmatprep.subr.mxu0 0.0
        %340 = vmatpush1.msra.mxu0 0.0
        %341 = vmatprep.subr.mxu0 0.0
        %342 = vmatpush1.msra.mxu0 0.0
        %343 = vmatprep.subr.mxu0 0.0
        %344 = vmatpush1.msra.mxu0 0.0
        %345 = vmatprep.subr.mxu0 0.0
        %346 = vmatpush1.msra.mxu0 0.0
        %347 = vmatprep.subr.mxu0 0.0
        %348 = vmatpush1.msra.mxu0 0.0
        %349 = vmatprep.subr.mxu0 0.0
        %350 = vmatpush1.msra.mxu0 0.0
        %351 = vmatprep.subr.mxu0 0.0
        %352 = vmatpush1.msra.mxu0 0.0
        %353 = vmatprep.subr.mxu0 0.0
        %354 = vmatpush1.msra.mxu0 0.0
        %355 = vmatprep.subr.mxu0 0.0
        %356 = vmatpush1.msra.mxu0 0.0
        %357 = vmatprep.subr.mxu0 0.0
        %358 = vmatpush1.msra.mxu0 %v310
        %359 = vmatprep.subr.mxu0 0.0
        %360 = vmatpush1.msra.mxu0 %v309
        %361 = vmatprep.subr.mxu0 0.0
        %362 = vmatpush2.msra.mxu0 0.0
        %363 = vmatprep.subr.mxu0 0.0
        %364 = vmatpush2.msra.mxu0 0.0
        %365 = vmatprep.subr.mxu0 0.0
        %366 = vmatpush2.msra.mxu0 0.0
        %367 = vmatprep.subr.mxu0 0.0
        %368 = vmatpush2.msra.mxu0 0.0
        %369 = vmatprep.subr.mxu0 0.0
        %370 = vmatpush2.msra.mxu0 0.0
        %371 = vmatprep.subr.mxu0 0.0
        %372 = vmatpush2.msra.mxu0 0.0
        %373 = vmatprep.subr.mxu0 0.0
        %374 = vmatpush2.msra.mxu0 0.0
        %375 = vmatprep.subr.mxu0 0.0
        %376 = vmatpush2.msra.mxu0 0.0
        %377 = vmatprep.subr.mxu0 0.0
        %378 = vmatpush2.msra.mxu0 0.0
        %379 = vmatprep.subr.mxu0 0.0
        %380 = vmatpush2.msra.mxu0 0.0
        %381 = vmatprep.subr.mxu0 0.0
        %382 = vmatpush2.msra.mxu0 0.0
        %383 = vmatprep.subr.mxu0 0.0
        %384 = vmatpush2.msra.mxu0 0.0
        %385 = vmatprep.subr.mxu0 0.0
        %386 = vmatpush2.msra.mxu0 0.0
        %387 = vmatprep.subr.mxu0 0.0
        %388 = vmatpush2.msra.mxu0 0.0
        %389 = vmatprep.subr.mxu0 0.0
        %390 = vmatpush2.msra.mxu0 0.0
        %391 = vmatprep.subr.mxu0 0.0
        %392 = vmatpush2.msra.mxu0 0.0
        %393 = vmatprep.mubr.f32.mxu0 0.0
        %394 = vmatmul.mubr.f32.gmra.mxu0 %v327
        %v395 = vpop.f32.mrf.mxu0
        %v396 = vadd.f32 0.0, %v395
        %v397 = vpop.f32.mrf.mxu0
        %398 = vdwg.mxu0
        %v399 = vld [vmem:[%s2] sm:$0x1]
        %v400 = vmul.f32 %v396, %v399
        %v401 = vld [vmem:[%s3] sm:$0x1]
        %v402 = vadd.f32 %v400, %v401
        %v403 = vmax.f32 %v402, 0.0
        %v404 = vld [vmem:[%s4] sm:$0xf]
        %vm405 = vcmask 31744
        %v407 = vsel %vm405, %v403, 0
        %vm409 = vcmask 1043456
        %v411 = vsel %vm409, %v404, 0
        %413 = vmatprep.subr.mxu0 0.0
        %414 = vmatpush1.msra.mxu0 0.0
        %415 = vmatprep.subr.mxu0 0.0
        %416 = vmatpush1.msra.mxu0 0.0
        %417 = vmatprep.subr.mxu0 0.0
        %418 = vmatpush1.msra.mxu0 0.0
        %419 = vmatprep.subr.mxu0 0.0
        %420 = vmatpush1.msra.mxu0 0.0
        %421 = vmatprep.subr.mxu0 0.0
        %422 = vmatpush1.msra.mxu0 0.0
        %423 = vmatprep.subr.mxu0 0.0
        %424 = vmatpush1.msra.mxu0 0.0
        %425 = vmatprep.subr.mxu0 0.0
        %426 = vmatpush1.msra.mxu0 0.0
        %427 = vmatprep.subr.mxu0 0.0
        %428 = vmatpush1.msra.mxu0 0.0
        %429 = vmatprep.subr.mxu0 0.0
        %430 = vmatpush1.msra.mxu0 0.0
        %431 = vmatprep.subr.mxu0 0.0
        %432 = vmatpush1.msra.mxu0 0.0
        %433 = vmatprep.subr.mxu0 0.0
        %434 = vmatpush1.msra.mxu0 0.0
        %435 = vmatprep.subr.mxu0 0.0
        %436 = vmatpush1.msra.mxu0 0.0
        %437 = vmatprep.subr.mxu0 0.0
        %438 = vmatpush1.msra.mxu0 0.0
        %439 = vmatprep.subr.mxu0 0.0
        %440 = vmatpush1.msra.mxu0 0.0
        %441 = vmatprep.subr.mxu0 0.0
        %442 = vmatpush1.msra.mxu0 0.0
        %443 = vmatprep.subr.mxu0 0.0
        %444 = vmatpush1.msra.mxu0 %v411
        %445 = vmatprep.subr.mxu0 0.0
        %446 = vmatpush2.msra.mxu0 0.0
        %447 = vmatprep.subr.mxu0 0.0
        %448 = vmatpush2.msra.mxu0 0.0
        %449 = vmatprep.subr.mxu0 0.0
        %450 = vmatpush2.msra.mxu0 0.0
        %451 = vmatprep.subr.mxu0 0.0
        %452 = vmatpush2.msra.mxu0 0.0
        %453 = vmatprep.subr.mxu0 0.0
        %454 = vmatpush2.msra.mxu0 0.0
        %455 = vmatprep.subr.mxu0 0.0
        %456 = vmatpush2.msra.mxu0 0.0
        %457 = vmatprep.subr.mxu0 0.0
        %458 = vmatpush2.msra.mxu0 0.0
        %459 = vmatprep.subr.mxu0 0.0
        %460 = vmatpush2.msra.mxu0 0.0
        %461 = vmatprep.subr.mxu0 0.0
        %462 = vmatpush2.msra.mxu0 0.0
        %463 = vmatprep.subr.mxu0 0.0
        %464 = vmatpush2.msra.mxu0 0.0
        %465 = vmatprep.subr.mxu0 0.0
        %466 = vmatpush2.msra.mxu0 0.0
        %467 = vmatprep.subr.mxu0 0.0
        %468 = vmatpush2.msra.mxu0 0.0
        %469 = vmatprep.subr.mxu0 0.0
        %470 = vmatpush2.msra.mxu0 0.0
        %471 = vmatprep.subr.mxu0 0.0
        %472 = vmatpush2.msra.mxu0 0.0
        %473 = vmatprep.subr.mxu0 0.0
        %474 = vmatpush2.msra.mxu0 0.0
        %475 = vmatprep.subr.mxu0 0.0
        %476 = vmatpush2.msra.mxu0 0.0
        %477 = vmatprep.mubr.f32.mxu0 0.0
        %478 = vmatmul.mubr.f32.gmra.mxu0 %v407
        %v479 = vpop.f32.mrf.mxu0
        %v480 = vadd.f32 0.0, %v479
        %v481 = vpop.f32.mrf.mxu0
        %482 = vdwg.mxu0
        %v483 = vld [vmem:[%s5] sm:$0x1]
        %v484 = vmul.f32 %v480, %v483
        %v485 = vld [vmem:[%s6] sm:$0x1]
        %v486 = vadd.f32 %v484, %v485
        %v487 = vadd.f32 %v486, 3.0
        %v488 = vmax.f32 %v487, 0.0
        %v489 = vmin.f32 %v488, 6.0
        %v490 = vmul.f32 %v489, 0.16666667
        %v491 = vlaneseq
        %v492 = vshrl.u32 %v491, 7
        %v493 = vsub.s32 0, %v492
        %v494 = vrot.slane %v490, %v493
        %496 = vbcast.lane.b32.xlu0 %v494, 256
        %v497 = vpop.permute.xlu0 %496
        %s499 = sor.u32 256, 8
        %500 = vbcast.lane.b32.xlu0 %v494, %s499
        %v501 = vpop.permute.xlu0 %500
        %v502 = vmul.f32 %v297, %v497
        %v503 = vmul.f32 %v298, %v497
        %v504 = vmul.f32 %v299, %v501
        %v505 = vmul.f32 %v300, %v501
        %506 = vst [vmem:[%s296] sm:$0xff] %v502
        %507 = vst [vmem:[%s296 + $0x8] sm:$0xff] %v503
        %508 = vst [vmem:[%s296 + $0x10] sm:$0xff] %v504
        %509 = vst [vmem:[%s296 + $0x18] sm:$0xff] %v505
        %s510 = sand.u32 %s184, 1
        %s511 = scalar_lea.sflag [#allocation4], %s510
        %s512 = sand.u32 %s184, 1
        %s513 = smul.addr %s512, 32
        %s514 = scalar_lea.vmem [#allocation5], %s513
        // Predicated region
        $region53: #{tpu_custom_call.1} parent=47 // pred_check
          %p515 = pneg %p194
        $region54: #{tpu_custom_call.1} parent=47 // pred_check_branch
          %517 = sbr.rel (%p515) target = $region56
        $region55: #{tpu_custom_call.1} parent=47 // pred_region
          %s519 = ssub.s32 512, 512
          %520 = vsyncadd %s511, %s519
          %s521 = smul.addr %s24, 4
          %s522 = smul.addr %s521, 128
          %s523 = scalar_lea.hbm %s7, %s522
          %s524 = sshll.u32 %s514, 4
          %s525 = int_to_ptr.vmem [resolvable:$true] %s524
          %530 = dma.vmem_to_hbm [thread:$0]  %s525, 512, %s523, %s511, 256, 256, 16
        $region56: #{tpu_custom_call.1} parent=47 // pred_fallthru
          _
      $region48: #{tpu_custom_call.1} parent=5 // pred_fallthru
        _
      %p531 = scmp.le.s32.totalorder 2, %s19
      // Predicated region
      $region57: #{tpu_custom_call.1} parent=5 // pred_check
        %p532 = pneg %p531
      $region58: #{tpu_custom_call.1} parent=5 // pred_check_branch
        %534 = sbr.rel (%p532) target = $region60
      $region59: #{tpu_custom_call.1} parent=5 // pred_region
        %s535 = ssub.s32 %s19, 2
        // Predicated region
        $region61: #{tpu_custom_call.1} parent=59 // pred_check
          %p536 = pneg %p200
        $region62: #{tpu_custom_call.1} parent=59 // pred_check_branch
          %538 = sbr.rel (%p536) target = $region64
        $region63: #{tpu_custom_call.1} parent=59 // pred_region
          %s539 = sand.u32 %s185, 1
          %s540 = scalar_lea.sflag [#allocation4], %s539
          %s541 = sand.u32 %s185, 1
          %s542 = smul.addr %s541, 32
          %s543 = scalar_lea.vmem [#allocation5], %s542
          %544 = dma.done %s540, 512
        $region64: #{tpu_custom_call.1} parent=59 // pred_fallthru
          _
      $region60: #{tpu_custom_call.1} parent=5 // pred_fallthru
        _
    $region6: #{tpu_custom_call.1} parent=1 // loop_footer
      %s23 = sadd.s32 1, %s19
    $region7: #{tpu_custom_call.1} parent=1 // loop_footer_branch
      %18 = sbr.rel target = $region3
    $region8: #{tpu_custom_call.1} parent=1 // loop_exit
      _
    %545 = vsyncpa [#allocation3], 1
    %s546 = scalar_lea.sflag [#allocation3], 1
    %547 = vsyncpa %s546, 1
    %548 = vsyncpa [#allocation4], 1
    %s549 = scalar_lea.sflag [#allocation4], 1
    %550 = vsyncpa %s549, 1

</llo_original>
